<compile_context>
chip_gen: v7x
topology: tpu7x:2x2x1
jax: 0.10.0
libtpu: 0.0.40
codegen_flags: <defaults>
</compile_context>

<pallas_src>
import functools

import jax
import jax.numpy as jnp
from jax.experimental import pallas as pl
from jax.experimental.pallas import tpu as pltpu


def _round_up(x: int, m: int) -> int:
    return (x + m - 1) // m * m


def mlp_kernel(f_ref, g_ref, r_ref,
               w1f_ref, w1g_ref, w1r_ref,
               w_stack_ref, b_stack_ref,
               o_ref):
    """Whole 4-layer MLP for one batch tile.

    Layer 1 uses the split-W1 trick (concat folded into the kernel); layers
    2-4 come from the stacked [3,H,H] weight tensor. ReLU after layers 1-3.
    Inputs arrive f32 and are cast to bf16 in-register (no bf16 HBM copies).
    """
    # --- Layer 1: x @ W1 + b1 == f @ W1f + g @ W1g + r * W1r + b1 ----------
    f_bf = f_ref[...].astype(jnp.bfloat16)
    g_bf = g_ref[...].astype(jnp.bfloat16)
    h = jnp.dot(f_bf, w1f_ref[...], preferred_element_type=jnp.float32)
    h = h + jnp.dot(g_bf, w1g_ref[...], preferred_element_type=jnp.float32)
    h = h + r_ref[...] * w1r_ref[...]            # [tm,1]*[1,H] outer product (VPU)
    h = h + b_stack_ref[0:1, :]
    h = jnp.maximum(h, 0.0)

    # --- Layers 2..4 (bf16 matmul, f32 accumulate; ReLU on 2 and 3) --------
    for i in range(3):
        h = (jnp.dot(h.astype(jnp.bfloat16), w_stack_ref[i],
                     preferred_element_type=jnp.float32)
             + b_stack_ref[i + 1:i + 2, :])
        if i < 2:
            h = jnp.maximum(h, 0.0)

    o_ref[...] = h.astype(o_ref.dtype)


@functools.partial(jax.jit, static_argnames=("max_batch_tile", "out_dtype"))
def mlp_forward(f_fused, h_graph, reward, packed, max_batch_tile=1024,
                out_dtype=jnp.float32):
    """Glue: reshape/cast (no extra HBM copies) in JAX, hot path in Pallas."""
    w1f, w1g, w1r = packed["w1f"], packed["w1g"], packed["w1r"]
    w_stack, b_stack = packed["w_stack"], packed["b_stack"]
    d_f, H = w1f.shape
    d_g = w1g.shape[0]

    B = f_fused.shape[0]
    # .float() per the module; reshape is a free view. No bf16 copies here —
    # the bf16 cast happens inside the kernel (halves input HBM bytes).
    f = f_fused.reshape(B, d_f).astype(jnp.float32)
    g = h_graph.reshape(B, d_g).astype(jnp.float32)
    r = reward.reshape(-1, 1).astype(jnp.float32)

    # --- Batch tiling -------------------------------------------------------
    # Large tiles to amortize the ~0.35 us per-grid-step pipeline overhead;
    # at least 2 (even) tiles when the batch allows so v7x's two TensorCores
    # both get work; tm re-rounded to the sublane multiple after all math.
    max_batch_tile = max(int(max_batch_tile), 8)
    num_tiles = pl.cdiv(B, max_batch_tile)
    if B >= 32:
        num_tiles = max(num_tiles, 2)          # megacore: both TCs get work
    if num_tiles > 1 and num_tiles % 2:
        num_tiles += 1                         # even count balances the 2 TCs
    rows_per_tile = pl.cdiv(B, num_tiles)
    tm = _round_up(rows_per_tile, 8 if rows_per_tile <= 8 else 16)
    grid = pl.cdiv(B, tm)
    # No jnp.pad of f/g/r: a partial last tile is handled by Pallas block
    # semantics (avoids an extra full HBM read+write of the largest input).

    n_layers = b_stack.shape[0]
    out_itemsize = jnp.dtype(out_dtype).itemsize
    flops = 2 * B * (d_f * H + d_g * H + H + (n_layers - 1) * H * H)
    bytes_accessed = (f.size * 4 + g.size * 4 + r.size * 4
                      + w1f.size * 2 + w1g.size * 2 + w1r.size * 4
                      + w_stack.size * 2 + b_stack.size * 4
                      + B * H * out_itemsize)

    const2 = lambda i: (0, 0)
    out = pl.pallas_call(
        mlp_kernel,
        out_shape=jax.ShapeDtypeStruct((B, H), out_dtype),
        grid=(grid,),
        in_specs=[
            pl.BlockSpec((tm, d_f), lambda i: (i, 0)),       # f tile (f32)
            pl.BlockSpec((tm, d_g), lambda i: (i, 0)),       # g tile (f32)
            pl.BlockSpec((tm, 1), lambda i: (i, 0)),         # reward tile
            pl.BlockSpec((d_f, H), const2),                  # W1f (VMEM-resident)
            pl.BlockSpec((d_g, H), const2),                  # W1g
            pl.BlockSpec((1, H), const2),                    # W1r
            pl.BlockSpec(w_stack.shape, lambda i: (0, 0, 0)),# W2..W4 stacked
            pl.BlockSpec(b_stack.shape, const2),             # b1..b4 stacked
        ],
        out_specs=pl.BlockSpec((tm, H), lambda i: (i, 0)),
        compiler_params=pltpu.CompilerParams(
            dimension_semantics=("parallel",),
            vmem_limit_bytes=32 * 1024 * 1024),
        cost_estimate=pl.CostEstimate(flops=flops, transcendentals=0,
                                      bytes_accessed=bytes_accessed),
    )(f, g, r, w1f, w1g, w1r, w_stack, b_stack)

    return out


def init_params(key, f_fused_size, h_graph_size, hidden_dims):
    """Deterministic synthetic parameters (PyTorch nn.Linear-like init).

    Weights are stored already transposed to [in, out]; biases are [1, out].
    """
    d_in = f_fused_size[0] * f_fused_size[1] + h_graph_size + 1
    dims = [d_in] + list(hidden_dims)
    params = []
    for i in range(4):
        key, kw, kb = jax.random.split(key, 3)
        fan_in, fan_out = dims[i], dims[i + 1]
        bound = 1.0 / jnp.sqrt(fan_in)
        w = jax.random.uniform(kw, (fan_in, fan_out), jnp.float32, -bound, bound)
        b = jax.random.uniform(kb, (1, fan_out), jnp.float32, -bound, bound)
        params.append((w, b))
    return params


def pack_params(params, d_f, d_g):
    """Convert module params to the kernel layout: split W1, stack W2-4 / biases."""
    (w1, b1), (w2, b2), (w3, b3), (w4, b4) = params
    H = w1.shape[1]
    assert w1.shape[0] == d_f + d_g + 1, "W1 rows must match concat order [f|g|r]"
    assert w2.shape == (H, H) and w3.shape == (H, H) and w4.shape == (H, H), \
        "stacked-weight kernel path requires equal hidden dims (default [128]*4)"
    return dict(
        w1f=w1[:d_f].astype(jnp.bfloat16),
        w1g=w1[d_f:d_f + d_g].astype(jnp.bfloat16),
        w1r=w1[d_f + d_g:].astype(jnp.float32),                  # [1, H]
        w_stack=jnp.stack([w2, w3, w4]).astype(jnp.bfloat16),    # [3, H, H]
        b_stack=jnp.concatenate([b1, b2, b3, b4], 0).astype(jnp.float32),  # [4, H]
    )


def mlp_reference(f_fused, h_graph, reward, packed):
    """Pure-JAX reference with identical bf16 quantization for correctness check."""
    B = f_fused.shape[0]
    f = f_fused.reshape(B, -1).astype(jnp.bfloat16).astype(jnp.float32)
    g = h_graph.reshape(B, -1).astype(jnp.bfloat16).astype(jnp.float32)
    r = reward.reshape(-1, 1).astype(jnp.float32)
    w1f = packed["w1f"].astype(jnp.float32)
    w1g = packed["w1g"].astype(jnp.float32)
    w1r = packed["w1r"]
    w_stack = packed["w_stack"].astype(jnp.float32)
    b = packed["b_stack"]

    h = f @ w1f + g @ w1g + r * w1r + b[0:1]
    h = jnp.maximum(h, 0.0)
    for i in range(3):
        h = h.astype(jnp.bfloat16).astype(jnp.float32) @ w_stack[i] + b[i + 1:i + 2]
        if i < 2:
            h = jnp.maximum(h, 0.0)
    return h


if __name__ == "__main__":
    key = jax.random.PRNGKey(0)

    # Shapes implied by the module: f_fused [B, 13, 13], h_graph [B, gnn_hidden],
    # reward [B]; hidden_dims default [128]*4. B=8 fills one sublane vreg.
    B = 8
    f_fused_size = (13, 13)
    h_graph_size = 8
    hidden_dims = (128, 128, 128, 128)

    key, k1, k2, k3 = jax.random.split(key, 4)
    f_fused = jax.random.normal(k1, (B, *f_fused_size), jnp.float32)
    h_graph = jax.random.normal(k2, (B, h_graph_size), jnp.float32)
    reward = jax.random.normal(k3, (B,), jnp.float32)

    params = init_params(key, f_fused_size, h_graph_size, hidden_dims)
    packed = pack_params(params,
                         d_f=f_fused_size[0] * f_fused_size[1],
                         d_g=h_graph_size)

    out = mlp_forward(f_fused, h_graph, reward, packed)
    out = jax.block_until_ready(out)

    ref = mlp_reference(f_fused, h_graph, reward, packed)
    assert out.shape == (B, hidden_dims[-1])
    assert jnp.allclose(out, ref, atol=1e-3, rtol=1e-3), "mismatch vs reference"

    print("KERNEL_OK")
</pallas_src>

<mosaic_0001>
module attributes {stable_mosaic.version = 11 : i64} {
  func.func @mlp_kernel(%arg0: i32, %arg1: memref<8x169xf32, #tpu.memory_space<vmem>>, %arg2: memref<8x8xf32, #tpu.memory_space<vmem>>, %arg3: memref<8x1xf32, #tpu.memory_space<vmem>>, %arg4: memref<169x128xbf16, #tpu.memory_space<vmem>>, %arg5: memref<8x128xbf16, #tpu.memory_space<vmem>>, %arg6: memref<1x128xf32, #tpu.memory_space<vmem>>, %arg7: memref<3x128x128xbf16, #tpu.memory_space<vmem>>, %arg8: memref<4x128xf32, #tpu.memory_space<vmem>>, %arg9: memref<8x128xf32, #tpu.memory_space<vmem>>) attributes {dimension_semantics = [#tpu.dimension_semantics<parallel>], iteration_bounds = array<i64: 1>, scalar_prefetch = 0 : i64, scratch_operands = 0 : i64, tpu.core_type = #tpu.core_type<tc>, window_params = [{transform_indices = @transform_0, window_bounds = array<i64: 8, 169>}, {transform_indices = @transform_1, window_bounds = array<i64: 8, 8>}, {transform_indices = @transform_2, window_bounds = array<i64: 8, 1>}, {pipeline_mode = #tpu.pipeline_mode<synchronous>, transform_indices = @transform_3, window_bounds = array<i64: 169, 128>}, {pipeline_mode = #tpu.pipeline_mode<synchronous>, transform_indices = @transform_4, window_bounds = array<i64: 8, 128>}, {pipeline_mode = #tpu.pipeline_mode<synchronous>, transform_indices = @transform_5, window_bounds = array<i64: 1, 128>}, {pipeline_mode = #tpu.pipeline_mode<synchronous>, transform_indices = @transform_6, window_bounds = array<i64: 3, 128, 128>}, {pipeline_mode = #tpu.pipeline_mode<synchronous>, transform_indices = @transform_7, window_bounds = array<i64: 4, 128>}, {transform_indices = @transform_8, window_bounds = array<i64: 8, 128>}]} {
    %c0 = arith.constant 0 : index
    %c0_0 = arith.constant 0 : index
    %0 = vector.load %arg1[%c0, %c0_0] : memref<8x169xf32, #tpu.memory_space<vmem>>, vector<8x169xf32>
    %1 = arith.truncf %0 : vector<8x169xf32> to vector<8x169xbf16>
    %c0_1 = arith.constant 0 : index
    %c0_2 = arith.constant 0 : index
    %2 = vector.load %arg2[%c0_1, %c0_2] : memref<8x8xf32, #tpu.memory_space<vmem>>, vector<8x8xf32>
    %3 = arith.truncf %2 : vector<8x8xf32> to vector<8x8xbf16>
    %c0_3 = arith.constant 0 : index
    %c0_4 = arith.constant 0 : index
    %4 = vector.load %arg4[%c0_3, %c0_4] : memref<169x128xbf16, #tpu.memory_space<vmem>>, vector<169x128xbf16>
    %cst = arith.constant dense<0.000000e+00> : vector<8x128xf32>
    %5 = tpu.matmul %1, %4, %cst {dimension_numbers = #tpu.dot_dimension_numbers<[1], [0], [0], [1], [0, 0, 1, 1], [], []>} : vector<8x169xbf16>, vector<169x128xbf16>, vector<8x128xf32> -> vector<8x128xf32>
    %c0_5 = arith.constant 0 : index
    %c0_6 = arith.constant 0 : index
    %6 = vector.load %arg5[%c0_5, %c0_6] : memref<8x128xbf16, #tpu.memory_space<vmem>>, vector<8x128xbf16>
    %cst_7 = arith.constant dense<0.000000e+00> : vector<8x128xf32>
    %7 = tpu.matmul %3, %6, %cst_7 {dimension_numbers = #tpu.dot_dimension_numbers<[1], [0], [0], [1], [0, 0, 1, 1], [], []>} : vector<8x8xbf16>, vector<8x128xbf16>, vector<8x128xf32> -> vector<8x128xf32>
    %8 = arith.addf %5, %7 : vector<8x128xf32>
    %c0_8 = arith.constant 0 : index
    %c0_9 = arith.constant 0 : index
    %9 = vector.load %arg3[%c0_8, %c0_9] : memref<8x1xf32, #tpu.memory_space<vmem>>, vector<8x1xf32>
    %c0_10 = arith.constant 0 : index
    %c0_11 = arith.constant 0 : index
    %10 = vector.load %arg6[%c0_10, %c0_11] : memref<1x128xf32, #tpu.memory_space<vmem>>, vector<1x128xf32>
    %11 = vector.broadcast %9 : vector<8x1xf32> to vector<8x128xf32>
    %12 = vector.broadcast %10 : vector<1x128xf32> to vector<8x128xf32>
    %13 = arith.mulf %11, %12 : vector<8x128xf32>
    %14 = arith.addf %8, %13 : vector<8x128xf32>
    %c0_12 = arith.constant 0 : index
    %c0_13 = arith.constant 0 : index
    %15 = vector.load %arg8[%c0_12, %c0_13] : memref<4x128xf32, #tpu.memory_space<vmem>>, vector<1x128xf32>
    %16 = vector.broadcast %15 : vector<1x128xf32> to vector<8x128xf32>
    %17 = arith.addf %14, %16 : vector<8x128xf32>
    %cst_14 = arith.constant 0.000000e+00 : f32
    %18 = vector.broadcast %cst_14 : f32 to vector<8x128xf32>
    %19 = arith.maximumf %17, %18 : vector<8x128xf32>
    %20 = arith.truncf %19 : vector<8x128xf32> to vector<8x128xbf16>
    %c0_15 = arith.constant 0 : index
    %c0_16 = arith.constant 0 : index
    %c0_17 = arith.constant 0 : index
    %21 = vector.load %arg7[%c0_15, %c0_16, %c0_17] : memref<3x128x128xbf16, #tpu.memory_space<vmem>>, vector<1x128x128xbf16>
    %22 = vector.shape_cast %21 : vector<1x128x128xbf16> to vector<128x128xbf16>
    %cst_18 = arith.constant dense<0.000000e+00> : vector<8x128xf32>
    %23 = tpu.matmul %20, %22, %cst_18 {dimension_numbers = #tpu.dot_dimension_numbers<[1], [0], [0], [1], [0, 0, 1, 1], [], []>} : vector<8x128xbf16>, vector<128x128xbf16>, vector<8x128xf32> -> vector<8x128xf32>
    %c1 = arith.constant 1 : index
    %c0_19 = arith.constant 0 : index
    %24 = vector.load %arg8[%c1, %c0_19] : memref<4x128xf32, #tpu.memory_space<vmem>>, vector<1x128xf32>
    %25 = vector.broadcast %24 : vector<1x128xf32> to vector<8x128xf32>
    %26 = arith.addf %23, %25 : vector<8x128xf32>
    %cst_20 = arith.constant 0.000000e+00 : f32
    %27 = vector.broadcast %cst_20 : f32 to vector<8x128xf32>
    %28 = arith.maximumf %26, %27 : vector<8x128xf32>
    %29 = arith.truncf %28 : vector<8x128xf32> to vector<8x128xbf16>
    %c1_21 = arith.constant 1 : index
    %c0_22 = arith.constant 0 : index
    %c0_23 = arith.constant 0 : index
    %30 = vector.load %arg7[%c1_21, %c0_22, %c0_23] : memref<3x128x128xbf16, #tpu.memory_space<vmem>>, vector<1x128x128xbf16>
    %31 = vector.shape_cast %30 : vector<1x128x128xbf16> to vector<128x128xbf16>
    %cst_24 = arith.constant dense<0.000000e+00> : vector<8x128xf32>
    %32 = tpu.matmul %29, %31, %cst_24 {dimension_numbers = #tpu.dot_dimension_numbers<[1], [0], [0], [1], [0, 0, 1, 1], [], []>} : vector<8x128xbf16>, vector<128x128xbf16>, vector<8x128xf32> -> vector<8x128xf32>
    %c2 = arith.constant 2 : index
    %c0_25 = arith.constant 0 : index
    %33 = vector.load %arg8[%c2, %c0_25] : memref<4x128xf32, #tpu.memory_space<vmem>>, vector<1x128xf32>
    %34 = vector.broadcast %33 : vector<1x128xf32> to vector<8x128xf32>
    %35 = arith.addf %32, %34 : vector<8x128xf32>
    %cst_26 = arith.constant 0.000000e+00 : f32
    %36 = vector.broadcast %cst_26 : f32 to vector<8x128xf32>
    %37 = arith.maximumf %35, %36 : vector<8x128xf32>
    %38 = arith.truncf %37 : vector<8x128xf32> to vector<8x128xbf16>
    %c2_27 = arith.constant 2 : index
    %c0_28 = arith.constant 0 : index
    %c0_29 = arith.constant 0 : index
    %39 = vector.load %arg7[%c2_27, %c0_28, %c0_29] : memref<3x128x128xbf16, #tpu.memory_space<vmem>>, vector<1x128x128xbf16>
    %40 = vector.shape_cast %39 : vector<1x128x128xbf16> to vector<128x128xbf16>
    %cst_30 = arith.constant dense<0.000000e+00> : vector<8x128xf32>
    %41 = tpu.matmul %38, %40, %cst_30 {dimension_numbers = #tpu.dot_dimension_numbers<[1], [0], [0], [1], [0, 0, 1, 1], [], []>} : vector<8x128xbf16>, vector<128x128xbf16>, vector<8x128xf32> -> vector<8x128xf32>
    %c3 = arith.constant 3 : index
    %c0_31 = arith.constant 0 : index
    %42 = vector.load %arg8[%c3, %c0_31] : memref<4x128xf32, #tpu.memory_space<vmem>>, vector<1x128xf32>
    %43 = vector.broadcast %42 : vector<1x128xf32> to vector<8x128xf32>
    %44 = arith.addf %41, %43 : vector<8x128xf32>
    %c0_32 = arith.constant 0 : index
    %c0_33 = arith.constant 0 : index
    %45 = vector.load %arg9[%c0_32, %c0_33] : memref<8x128xf32, #tpu.memory_space<vmem>>, vector<8x128xf32>
    tpu.vector_store %arg9[%c0_32, %c0_33], %44 {strides = array<i32>} : memref<8x128xf32, #tpu.memory_space<vmem>>, vector<8x128xf32>,
    return
  }
  func.func @transform_0(%arg0: i32) -> (i32, i32) {
    %c0_i32 = arith.constant 0 : i32
    %c0_i32_0 = arith.constant 0 : i32
    return %arg0, %c0_i32 : i32, i32
  }
  func.func @transform_1(%arg0: i32) -> (i32, i32) {
    %c0_i32 = arith.constant 0 : i32
    %c0_i32_0 = arith.constant 0 : i32
    return %arg0, %c0_i32 : i32, i32
  }
  func.func @transform_2(%arg0: i32) -> (i32, i32) {
    %c0_i32 = arith.constant 0 : i32
    %c0_i32_0 = arith.constant 0 : i32
    return %arg0, %c0_i32 : i32, i32
  }
  func.func @transform_3(%arg0: i32) -> (i32, i32) {
    %c0_i32 = arith.constant 0 : i32
    %c0_i32_0 = arith.constant 0 : i32
    %c0_i32_1 = arith.constant 0 : i32
    return %c0_i32, %c0_i32_0 : i32, i32
  }
  func.func @transform_4(%arg0: i32) -> (i32, i32) {
    %c0_i32 = arith.constant 0 : i32
    %c0_i32_0 = arith.constant 0 : i32
    %c0_i32_1 = arith.constant 0 : i32
    return %c0_i32, %c0_i32_0 : i32, i32
  }
  func.func @transform_5(%arg0: i32) -> (i32, i32) {
    %c0_i32 = arith.constant 0 : i32
    %c0_i32_0 = arith.constant 0 : i32
    %c0_i32_1 = arith.constant 0 : i32
    return %c0_i32, %c0_i32_0 : i32, i32
  }
  func.func @transform_6(%arg0: i32) -> (i32, i32, i32) {
    %c0_i32 = arith.constant 0 : i32
    %c0_i32_0 = arith.constant 0 : i32
    %c0_i32_1 = arith.constant 0 : i32
    %c0_i32_2 = arith.constant 0 : i32
    return %c0_i32, %c0_i32_0, %c0_i32_1 : i32, i32, i32
  }
  func.func @transform_7(%arg0: i32) -> (i32, i32) {
    %c0_i32 = arith.constant 0 : i32
    %c0_i32_0 = arith.constant 0 : i32
    %c0_i32_1 = arith.constant 0 : i32
    return %c0_i32, %c0_i32_0 : i32, i32
  }
  func.func @transform_8(%arg0: i32) -> (i32, i32) {
    %c0_i32 = arith.constant 0 : i32
    %c0_i32_0 = arith.constant 0 : i32
    return %arg0, %c0_i32 : i32, i32
  }
}

</mosaic_0001>

<llo_original>
// kernel: mlp_forward.1
$region0: #{mlp_forward.1}
  #allocation0 [shape = 'u32[]', space=smem, size = 0x4, offset = 0x4, fixed_abs, tag = 'smem constant byte address 0x4 - core index']
  #allocation1 [shape = 'u32[144,128]{1,0:T(1,128)}', space=vmem, size = 0x12000, scoped, tag = 'internal scratch']
  %s0 = inlined_call_operand.vmem [shape: f32[8,169], index: 0, kind: input, shape index: {}]
  %s1 = inlined_call_operand.vmem [shape: f32[8,8], index: 1, kind: input, shape index: {}]
  %s2 = inlined_call_operand.vmem [shape: f32[8,1], index: 2, kind: input, shape index: {}]
  %s3 = inlined_call_operand.vmem [shape: bf16[169,128], index: 3, kind: input, shape index: {}]
  %s4 = inlined_call_operand.vmem [shape: bf16[8,128], index: 4, kind: input, shape index: {}]
  %s5 = inlined_call_operand.vmem [shape: f32[1,128], index: 5, kind: input, shape index: {}]
  %s6 = inlined_call_operand.vmem [shape: bf16[3,128,128], index: 6, kind: input, shape index: {}]
  %s7 = inlined_call_operand.vmem [shape: f32[4,128], index: 7, kind: input, shape index: {}]
  %s8 = inlined_call_operand.hbm [shape: f32[8,128], index: 8, kind: output, shape index: {}]
  %s9 = sld [smem:[#allocation0]]
  $region42: #{mlp_forward.1} parent=0
    _
  %s11 = ssub.s32 1, %s9
  %s12 = scalar_select 0, %s11, %s9
  $region1: #{mlp_forward.1} parent=0
    #allocation2 [shape = 'u8[4096]{0}', space=vmem, size = 0x1000, scoped, tag = 'output window, operand 0, single buffered']
    #allocation3 [shape = 's32[1]{0}', space=sflag, size = 0x4, scoped, tag = 'scoped memory for mlp_forward.1']
    %13 = vsyncpa [#allocation3], 0
    // Predicated region
    $region2: #{mlp_forward.1} parent=1 // pred_check
      _
    $region3: #{mlp_forward.1} parent=1 // pred_check_branch
      %15 = sbr.rel (0) target = $region5
    $region4: #{mlp_forward.1} parent=1 // pred_region
      _
    $region5: #{mlp_forward.1} parent=1 // pred_fallthru
      _
    // Predicated region
    $region6: #{mlp_forward.1} parent=1 // pred_check
      _
    $region7: #{mlp_forward.1} parent=1 // pred_check_branch
      %17 = sbr.rel (0) target = $region9
    $region8: #{mlp_forward.1} parent=1 // pred_region
      _
    $region9: #{mlp_forward.1} parent=1 // pred_fallthru
      _
    // Predicated region
    $region10: #{mlp_forward.1} parent=1 // pred_check
      _
    $region11: #{mlp_forward.1} parent=1 // pred_check_branch
      %19 = sbr.rel (0) target = $region13
    $region12: #{mlp_forward.1} parent=1 // pred_region
      _
    $region13: #{mlp_forward.1} parent=1 // pred_fallthru
      _
    // Predicated region
    $region14: #{mlp_forward.1} parent=1 // pred_check
      _
    $region15: #{mlp_forward.1} parent=1 // pred_check_branch
      %21 = sbr.rel (0) target = $region17
    $region16: #{mlp_forward.1} parent=1 // pred_region
      _
    $region17: #{mlp_forward.1} parent=1 // pred_fallthru
      _
    // Predicated region
    $region18: #{mlp_forward.1} parent=1 // pred_check
      _
    $region19: #{mlp_forward.1} parent=1 // pred_check_branch
      %23 = sbr.rel (0) target = $region21
    $region20: #{mlp_forward.1} parent=1 // pred_region
      _
    $region21: #{mlp_forward.1} parent=1 // pred_fallthru
      _
    // Predicated region
    $region22: #{mlp_forward.1} parent=1 // pred_check
      _
    $region23: #{mlp_forward.1} parent=1 // pred_check_branch
      %25 = sbr.rel (0) target = $region25
    $region24: #{mlp_forward.1} parent=1 // pred_region
      _
    $region25: #{mlp_forward.1} parent=1 // pred_fallthru
      _
    // Predicated region
    $region26: #{mlp_forward.1} parent=1 // pred_check
      _
    $region27: #{mlp_forward.1} parent=1 // pred_check_branch
      %27 = sbr.rel (0) target = $region29
    $region28: #{mlp_forward.1} parent=1 // pred_region
      _
    $region29: #{mlp_forward.1} parent=1 // pred_fallthru
      _
    // Predicated region
    $region30: #{mlp_forward.1} parent=1 // pred_check
      _
    $region31: #{mlp_forward.1} parent=1 // pred_check_branch
      %29 = sbr.rel (0) target = $region33
    $region32: #{mlp_forward.1} parent=1 // pred_region
      _
    $region33: #{mlp_forward.1} parent=1 // pred_fallthru
      _
    %v31 = vld [vmem:[%s0] sm:$0xff]
    %v32 = vld [vmem:[%s0 + $0x8] sm:$0xff]
    %v33 = vpack.c.bf16 %v31, %v31
    %v34 = vpack.c.bf16 %v32, %v32
    %v35 = vld [vmem:[%s1] sm:$0xff]
    %v36 = vpack.c.bf16 %v35, %v35
    %v37 = vld [vmem:[%s3] sm:$0xf]
    %v38 = vld [vmem:[%s3 + $0x4] sm:$0xf]
    %v39 = vld [vmem:[%s3 + $0x8] sm:$0xf]
    %v40 = vld [vmem:[%s3 + $0xc] sm:$0xf]
    %v41 = vld [vmem:[%s3 + $0x10] sm:$0xf]
    %v42 = vld [vmem:[%s3 + $0x14] sm:$0xf]
    %v43 = vld [vmem:[%s3 + $0x18] sm:$0xf]
    %v44 = vld [vmem:[%s3 + $0x1c] sm:$0xf]
    %v45 = vld [vmem:[%s3 + $0x20] sm:$0xf]
    %v46 = vld [vmem:[%s3 + $0x24] sm:$0xf]
    %v47 = vld [vmem:[%s3 + $0x28] sm:$0xf]
    %v48 = vld [vmem:[%s3 + $0x2c] sm:$0xf]
    %v49 = vld [vmem:[%s3 + $0x30] sm:$0xf]
    %v50 = vld [vmem:[%s3 + $0x34] sm:$0xf]
    %v51 = vld [vmem:[%s3 + $0x38] sm:$0xf]
    %v52 = vld [vmem:[%s3 + $0x3c] sm:$0xf]
    %v53 = vld [vmem:[%s3 + $0x40] sm:$0xf]
    %v54 = vld [vmem:[%s3 + $0x44] sm:$0xf]
    %v55 = vld [vmem:[%s3 + $0x48] sm:$0xf]
    %v56 = vld [vmem:[%s3 + $0x4c] sm:$0xf]
    %v57 = vld [vmem:[%s3 + $0x50] sm:$0xf]
    %v58 = vld [vmem:[%s3 + $0x54] sm:$0x1]
    %v59 = vld [vmem:[%s4] sm:$0xf]
    %vm60 = vcmask 64512
    %v62 = vsel %vm60, %v36, 0
    %vm64 = vcmask 1043456
    %v66 = vsel %vm64, %v59, 0
    %68 = vmatprep.subr.bf16.mxu0 0
    %69 = vmatpush1.bf16.msra.mxu0 %v66
    %70 = vmatprep.subr.bf16.mxu0 0
    %71 = vmatpush1.bf16.msra.mxu0 0
    %72 = vmatprep.subr.bf16.mxu0 0
    %73 = vmatpush1.bf16.msra.mxu0 0
    %74 = vmatprep.subr.bf16.mxu0 0
    %75 = vmatpush1.bf16.msra.mxu0 0
    %76 = vmatprep.subr.bf16.mxu0 0
    %77 = vmatpush1.bf16.msra.mxu0 0
    %78 = vmatprep.subr.bf16.mxu0 0
    %79 = vmatpush1.bf16.msra.mxu0 0
    %80 = vmatprep.subr.bf16.mxu0 0
    %81 = vmatpush1.bf16.msra.mxu0 0
    %82 = vmatprep.subr.bf16.mxu0 0
    %83 = vmatpush1.bf16.msra.mxu0 0
    %84 = vmatprep.subr.bf16.mxu0 0
    %85 = vmatpush1.bf16.msra.mxu0 0
    %86 = vmatprep.subr.bf16.mxu0 0
    %87 = vmatpush1.bf16.msra.mxu0 0
    %88 = vmatprep.subr.bf16.mxu0 0
    %89 = vmatpush1.bf16.msra.mxu0 0
    %90 = vmatprep.subr.bf16.mxu0 0
    %91 = vmatpush1.bf16.msra.mxu0 0
    %92 = vmatprep.subr.bf16.mxu0 0
    %93 = vmatpush1.bf16.msra.mxu0 0
    %94 = vmatprep.subr.bf16.mxu0 0
    %95 = vmatpush1.bf16.msra.mxu0 0
    %96 = vmatprep.subr.bf16.mxu0 0
    %97 = vmatpush1.bf16.msra.mxu0 0
    %98 = vmatprep.subr.bf16.mxu0 0
    %99 = vmatpush1.bf16.msra.mxu0 0
    %100 = vmatprep.mubr.bf16.mxu0 0
    %101 = vmatmul.mubr.bf16.gmra.mrb[0].mxu0 %v62
    %v102 = vpop.f32.mrb[0].mxu0
    %v103 = vadd.f32 0.0, %v102
    %v104 = vpop.f32.mrb[0].mxu0
    %v105 = vpop.f32.mrb[0].mxu0
    %v106 = vpop.f32.mrb[0].mxu0
    %107 = vdwg.mxu0
    %v130 = vunpack.c.l.b16 %v37
    %v131 = vunpack.c.l.b16 %v38
    %v132 = vunpack.c.l.b16 %v39
    %v133 = vunpack.c.l.b16 %v40
    %v134 = vunpack.c.l.b16 %v41
    %v135 = vunpack.c.l.b16 %v42
    %v136 = vunpack.c.l.b16 %v43
    %v137 = vunpack.c.l.b16 %v44
    %v138 = vunpack.c.l.b16 %v45
    %v139 = vunpack.c.l.b16 %v46
    %v140 = vunpack.c.l.b16 %v47
    %v141 = vunpack.c.l.b16 %v48
    %v142 = vunpack.c.l.b16 %v49
    %v143 = vunpack.c.l.b16 %v50
    %v144 = vunpack.c.l.b16 %v51
    %v145 = vunpack.c.l.b16 %v52
    %v146 = vunpack.c.l.b16 %v53
    %v147 = vunpack.c.l.b16 %v54
    %v148 = vunpack.c.l.b16 %v55
    %v149 = vunpack.c.l.b16 %v56
    %v150 = vunpack.c.l.b16 %v57
    %v151 = vunpack.c.l.b16 %v58
    %v152 = vpack.c.b16 %v131, %v130
    %v153 = vpack.c.b16 %v133, %v132
    %v154 = vpack.c.b16 %v135, %v134
    %v155 = vpack.c.b16 %v137, %v136
    %v156 = vpack.c.b16 %v139, %v138
    %v157 = vpack.c.b16 %v141, %v140
    %v158 = vpack.c.b16 %v143, %v142
    %v159 = vpack.c.b16 %v145, %v144
    %v160 = vpack.c.b16 %v147, %v146
    %v161 = vpack.c.b16 %v149, %v148
    %v162 = vpack.c.b16 %v151, %v150
    %vm173 = vcmask 334848
    %v175 = vsel %vm173, %v34, 0
    %vm177 = vcmask 1044480
    %v178 = vsel %vm64, 4294967295, 65535
    %v179 = vsel %vm177, %v178, 0
    %v181 = vand.u32 %v162, %v179
    %183 = vmatprep.subr.bf16.mxu0 0
    %184 = vmatpush1.bf16.msra.mxu0 %v152
    %185 = vmatprep.subr.bf16.mxu0 0
    %186 = vmatpush1.bf16.msra.mxu0 %v153
    %187 = vmatprep.subr.bf16.mxu0 0
    %188 = vmatpush1.bf16.msra.mxu0 %v154
    %189 = vmatprep.subr.bf16.mxu0 0
    %190 = vmatpush1.bf16.msra.mxu0 %v155
    %191 = vmatprep.subr.bf16.mxu0 0
    %192 = vmatpush1.bf16.msra.mxu0 %v156
    %193 = vmatprep.subr.bf16.mxu0 0
    %194 = vmatpush1.bf16.msra.mxu0 %v157
    %195 = vmatprep.subr.bf16.mxu0 0
    %196 = vmatpush1.bf16.msra.mxu0 %v158
    %197 = vmatprep.subr.bf16.mxu0 0
    %198 = vmatpush1.bf16.msra.mxu0 %v159
    %199 = vmatprep.subr.bf16.mxu0 0
    %200 = vmatpush1.bf16.msra.mxu0 %v160
    %201 = vmatprep.subr.bf16.mxu0 0
    %202 = vmatpush1.bf16.msra.mxu0 %v161
    %203 = vmatprep.subr.bf16.mxu0 0
    %204 = vmatpush1.bf16.msra.mxu0 %v181
    %205 = vmatprep.subr.bf16.mxu0 0
    %206 = vmatpush1.bf16.msra.mxu0 0
    %207 = vmatprep.subr.bf16.mxu0 0
    %208 = vmatpush1.bf16.msra.mxu0 0
    %209 = vmatprep.subr.bf16.mxu0 0
    %210 = vmatpush1.bf16.msra.mxu0 0
    %211 = vmatprep.subr.bf16.mxu0 0
    %212 = vmatpush1.bf16.msra.mxu0 0
    %213 = vmatprep.subr.bf16.mxu0 0
    %214 = vmatpush1.bf16.msra.mxu0 0
    %215 = vmatprep.mubr.bf16.mxu0 %v175
    %216 = vmatmul.mubr.bf16.gmra.mrb[0].mxu0 %v33
    %v217 = vpop.f32.mrb[0].mxu0
    %v218 = vadd.f32 %v103, %v217
    %v219 = vpop.f32.mrb[0].mxu0
    %v220 = vpop.f32.mrb[0].mxu0
    %v221 = vpop.f32.mrb[0].mxu0
    %222 = vdwg.mxu0
    %v223 = vld [vmem:[%s2] sm:$0xff]
    %v224 = vld [vmem:[%s5] sm:$0x1]
    %226 = vset.pattern.permute.xlu0 0
    %227 = vperm.xlu0 %226, %v223
    %v228 = vpop.permute.xlu0 %227
    %v231 = vlaneseq
    %v232 = vshrl.u32 %v231, 7
    %v233 = vsub.s32 0, %v232
    %v234 = vrot.slane %v224, %v233
    %v236 = vmul.f32 %v228, %v234
    %v237 = vadd.f32 %v218, %v236
    %v238 = vld [vmem:[%s7] sm:$0x1]
    %v239 = vlaneseq
    %v240 = vshrl.u32 %v239, 7
    %v241 = vsub.s32 0, %v240
    %v242 = vrot.slane %v238, %v241
    %v243 = vadd.f32 %v237, %v242
    %v244 = vmax.f32 %v243, 0.0
    %v245 = vpack.c.bf16 %v244, %v244
    %v246 = vld [vmem:[%s6] sm:$0xf]
    %v247 = vld [vmem:[%s6 + $0x4] sm:$0xf]
    %v248 = vld [vmem:[%s6 + $0x8] sm:$0xf]
    %v249 = vld [vmem:[%s6 + $0xc] sm:$0xf]
    %v250 = vld [vmem:[%s6 + $0x10] sm:$0xf]
    %v251 = vld [vmem:[%s6 + $0x14] sm:$0xf]
    %v252 = vld [vmem:[%s6 + $0x18] sm:$0xf]
    %v253 = vld [vmem:[%s6 + $0x1c] sm:$0xf]
    %v254 = vld [vmem:[%s6 + $0x20] sm:$0xf]
    %v255 = vld [vmem:[%s6 + $0x24] sm:$0xf]
    %v256 = vld [vmem:[%s6 + $0x28] sm:$0xf]
    %v257 = vld [vmem:[%s6 + $0x2c] sm:$0xf]
    %v258 = vld [vmem:[%s6 + $0x30] sm:$0xf]
    %v259 = vld [vmem:[%s6 + $0x34] sm:$0xf]
    %v260 = vld [vmem:[%s6 + $0x38] sm:$0xf]
    %v261 = vld [vmem:[%s6 + $0x3c] sm:$0xf]
    %v262 = vld [vmem:[%s7 + $0x1] sm:$0x1]
    %v263 = vlaneseq
    %v264 = vshrl.u32 %v263, 7
    %v265 = vsub.s32 0, %v264
    %v266 = vrot.slane %v262, %v265
    %v283 = vunpack.c.l.b16 %v246
    %v284 = vunpack.c.l.b16 %v247
    %v285 = vunpack.c.l.b16 %v248
    %v286 = vunpack.c.l.b16 %v249
    %v287 = vunpack.c.l.b16 %v250
    %v288 = vunpack.c.l.b16 %v251
    %v289 = vunpack.c.l.b16 %v252
    %v290 = vunpack.c.l.b16 %v253
    %v291 = vunpack.c.l.b16 %v254
    %v292 = vunpack.c.l.b16 %v255
    %v293 = vunpack.c.l.b16 %v256
    %v294 = vunpack.c.l.b16 %v257
    %v295 = vunpack.c.l.b16 %v258
    %v296 = vunpack.c.l.b16 %v259
    %v297 = vunpack.c.l.b16 %v260
    %v298 = vunpack.c.l.b16 %v261
    %v299 = vpack.c.b16 %v284, %v283
    %v300 = vpack.c.b16 %v286, %v285
    %v301 = vpack.c.b16 %v288, %v287
    %v302 = vpack.c.b16 %v290, %v289
    %v303 = vpack.c.b16 %v292, %v291
    %v304 = vpack.c.b16 %v294, %v293
    %v305 = vpack.c.b16 %v296, %v295
    %v306 = vpack.c.b16 %v298, %v297
    %315 = vmatprep.subr.bf16.mxu0 0
    %316 = vmatpush1.bf16.msra.mxu0 %v299
    %317 = vmatprep.subr.bf16.mxu0 0
    %318 = vmatpush1.bf16.msra.mxu0 %v300
    %319 = vmatprep.subr.bf16.mxu0 0
    %320 = vmatpush1.bf16.msra.mxu0 %v301
    %321 = vmatprep.subr.bf16.mxu0 0
    %322 = vmatpush1.bf16.msra.mxu0 %v302
    %323 = vmatprep.subr.bf16.mxu0 0
    %324 = vmatpush1.bf16.msra.mxu0 %v303
    %325 = vmatprep.subr.bf16.mxu0 0
    %326 = vmatpush1.bf16.msra.mxu0 %v304
    %327 = vmatprep.subr.bf16.mxu0 0
    %328 = vmatpush1.bf16.msra.mxu0 %v305
    %329 = vmatprep.subr.bf16.mxu0 0
    %330 = vmatpush1.bf16.msra.mxu0 %v306
    %331 = vmatprep.subr.bf16.mxu0 0
    %332 = vmatpush1.bf16.msra.mxu0 0
    %333 = vmatprep.subr.bf16.mxu0 0
    %334 = vmatpush1.bf16.msra.mxu0 0
    %335 = vmatprep.subr.bf16.mxu0 0
    %336 = vmatpush1.bf16.msra.mxu0 0
    %337 = vmatprep.subr.bf16.mxu0 0
    %338 = vmatpush1.bf16.msra.mxu0 0
    %339 = vmatprep.subr.bf16.mxu0 0
    %340 = vmatpush1.bf16.msra.mxu0 0
    %341 = vmatprep.subr.bf16.mxu0 0
    %342 = vmatpush1.bf16.msra.mxu0 0
    %343 = vmatprep.subr.bf16.mxu0 0
    %344 = vmatpush1.bf16.msra.mxu0 0
    %345 = vmatprep.subr.bf16.mxu0 0
    %346 = vmatpush1.bf16.msra.mxu0 0
    %347 = vmatprep.mubr.bf16.mxu0 0
    %348 = vmatmul.mubr.bf16.gmra.mrb[0].mxu0 %v245
    %v349 = vpop.f32.mrb[0].mxu0
    %v350 = vadd.f32 %v266, %v349
    %v351 = vpop.f32.mrb[0].mxu0
    %v352 = vpop.f32.mrb[0].mxu0
    %v353 = vpop.f32.mrb[0].mxu0
    %354 = vdwg.mxu0
    %v355 = vmax.f32 %v350, 0.0
    %v356 = vpack.c.bf16 %v355, %v355
    %s357 = scalar_lea.vmem %s6, 64
    %v358 = vld [vmem:[%s357] sm:$0xf]
    %v359 = vld [vmem:[%s357 + $0x4] sm:$0xf]
    %v360 = vld [vmem:[%s357 + $0x8] sm:$0xf]
    %v361 = vld [vmem:[%s357 + $0xc] sm:$0xf]
    %v362 = vld [vmem:[%s357 + $0x10] sm:$0xf]
    %v363 = vld [vmem:[%s357 + $0x14] sm:$0xf]
    %v364 = vld [vmem:[%s357 + $0x18] sm:$0xf]
    %v365 = vld [vmem:[%s357 + $0x1c] sm:$0xf]
    %v366 = vld [vmem:[%s357 + $0x20] sm:$0xf]
    %v367 = vld [vmem:[%s357 + $0x24] sm:$0xf]
    %v368 = vld [vmem:[%s357 + $0x28] sm:$0xf]
    %v369 = vld [vmem:[%s357 + $0x2c] sm:$0xf]
    %v370 = vld [vmem:[%s357 + $0x30] sm:$0xf]
    %v371 = vld [vmem:[%s357 + $0x34] sm:$0xf]
    %v372 = vld [vmem:[%s357 + $0x38] sm:$0xf]
    %v373 = vld [vmem:[%s357 + $0x3c] sm:$0xf]
    %v374 = vld [vmem:[%s7 + $0x2] sm:$0x1]
    %v375 = vlaneseq
    %v376 = vshrl.u32 %v375, 7
    %v377 = vsub.s32 0, %v376
    %v378 = vrot.slane %v374, %v377
    %v395 = vunpack.c.l.b16 %v358
    %v396 = vunpack.c.l.b16 %v359
    %v397 = vunpack.c.l.b16 %v360
    %v398 = vunpack.c.l.b16 %v361
    %v399 = vunpack.c.l.b16 %v362
    %v400 = vunpack.c.l.b16 %v363
    %v401 = vunpack.c.l.b16 %v364
    %v402 = vunpack.c.l.b16 %v365
    %v403 = vunpack.c.l.b16 %v366
    %v404 = vunpack.c.l.b16 %v367
    %v405 = vunpack.c.l.b16 %v368
    %v406 = vunpack.c.l.b16 %v369
    %v407 = vunpack.c.l.b16 %v370
    %v408 = vunpack.c.l.b16 %v371
    %v409 = vunpack.c.l.b16 %v372
    %v410 = vunpack.c.l.b16 %v373
    %v411 = vpack.c.b16 %v396, %v395
    %v412 = vpack.c.b16 %v398, %v397
    %v413 = vpack.c.b16 %v400, %v399
    %v414 = vpack.c.b16 %v402, %v401
    %v415 = vpack.c.b16 %v404, %v403
    %v416 = vpack.c.b16 %v406, %v405
    %v417 = vpack.c.b16 %v408, %v407
    %v418 = vpack.c.b16 %v410, %v409
    %427 = vmatprep.subr.bf16.mxu0 0
    %428 = vmatpush1.bf16.msra.mxu0 %v411
    %429 = vmatprep.subr.bf16.mxu0 0
    %430 = vmatpush1.bf16.msra.mxu0 %v412
    %431 = vmatprep.subr.bf16.mxu0 0
    %432 = vmatpush1.bf16.msra.mxu0 %v413
    %433 = vmatprep.subr.bf16.mxu0 0
    %434 = vmatpush1.bf16.msra.mxu0 %v414
    %435 = vmatprep.subr.bf16.mxu0 0
    %436 = vmatpush1.bf16.msra.mxu0 %v415
    %437 = vmatprep.subr.bf16.mxu0 0
    %438 = vmatpush1.bf16.msra.mxu0 %v416
    %439 = vmatprep.subr.bf16.mxu0 0
    %440 = vmatpush1.bf16.msra.mxu0 %v417
    %441 = vmatprep.subr.bf16.mxu0 0
    %442 = vmatpush1.bf16.msra.mxu0 %v418
    %443 = vmatprep.subr.bf16.mxu0 0
    %444 = vmatpush1.bf16.msra.mxu0 0
    %445 = vmatprep.subr.bf16.mxu0 0
    %446 = vmatpush1.bf16.msra.mxu0 0
    %447 = vmatprep.subr.bf16.mxu0 0
    %448 = vmatpush1.bf16.msra.mxu0 0
    %449 = vmatprep.subr.bf16.mxu0 0
    %450 = vmatpush1.bf16.msra.mxu0 0
    %451 = vmatprep.subr.bf16.mxu0 0
    %452 = vmatpush1.bf16.msra.mxu0 0
    %453 = vmatprep.subr.bf16.mxu0 0
    %454 = vmatpush1.bf16.msra.mxu0 0
    %455 = vmatprep.subr.bf16.mxu0 0
    %456 = vmatpush1.bf16.msra.mxu0 0
    %457 = vmatprep.subr.bf16.mxu0 0
    %458 = vmatpush1.bf16.msra.mxu0 0
    %459 = vmatprep.mubr.bf16.mxu0 0
    %460 = vmatmul.mubr.bf16.gmra.mrb[0].mxu0 %v356
    %v461 = vpop.f32.mrb[0].mxu0
    %v462 = vadd.f32 %v378, %v461
    %v463 = vpop.f32.mrb[0].mxu0
    %v464 = vpop.f32.mrb[0].mxu0
    %v465 = vpop.f32.mrb[0].mxu0
    %466 = vdwg.mxu0
    %v467 = vmax.f32 %v462, 0.0
    %v468 = vpack.c.bf16 %v467, %v467
    %s469 = scalar_lea.vmem %s6, 128
    %v470 = vld [vmem:[%s469] sm:$0xf]
    %v471 = vld [vmem:[%s469 + $0x4] sm:$0xf]
    %v472 = vld [vmem:[%s469 + $0x8] sm:$0xf]
    %v473 = vld [vmem:[%s469 + $0xc] sm:$0xf]
    %v474 = vld [vmem:[%s469 + $0x10] sm:$0xf]
    %v475 = vld [vmem:[%s469 + $0x14] sm:$0xf]
    %v476 = vld [vmem:[%s469 + $0x18] sm:$0xf]
    %v477 = vld [vmem:[%s469 + $0x1c] sm:$0xf]
    %v478 = vld [vmem:[%s469 + $0x20] sm:$0xf]
    %v479 = vld [vmem:[%s469 + $0x24] sm:$0xf]
    %v480 = vld [vmem:[%s469 + $0x28] sm:$0xf]
    %v481 = vld [vmem:[%s469 + $0x2c] sm:$0xf]
    %v482 = vld [vmem:[%s469 + $0x30] sm:$0xf]
    %v483 = vld [vmem:[%s469 + $0x34] sm:$0xf]
    %v484 = vld [vmem:[%s469 + $0x38] sm:$0xf]
    %v485 = vld [vmem:[%s469 + $0x3c] sm:$0xf]
    %v486 = vld [vmem:[%s7 + $0x3] sm:$0x1]
    %v487 = vlaneseq
    %v488 = vshrl.u32 %v487, 7
    %v489 = vsub.s32 0, %v488
    %v490 = vrot.slane %v486, %v489
    %v507 = vunpack.c.l.b16 %v470
    %v508 = vunpack.c.l.b16 %v471
    %v509 = vunpack.c.l.b16 %v472
    %v510 = vunpack.c.l.b16 %v473
    %v511 = vunpack.c.l.b16 %v474
    %v512 = vunpack.c.l.b16 %v475
    %v513 = vunpack.c.l.b16 %v476
    %v514 = vunpack.c.l.b16 %v477
    %v515 = vunpack.c.l.b16 %v478
    %v516 = vunpack.c.l.b16 %v479
    %v517 = vunpack.c.l.b16 %v480
    %v518 = vunpack.c.l.b16 %v481
    %v519 = vunpack.c.l.b16 %v482
    %v520 = vunpack.c.l.b16 %v483
    %v521 = vunpack.c.l.b16 %v484
    %v522 = vunpack.c.l.b16 %v485
    %v523 = vpack.c.b16 %v508, %v507
    %v524 = vpack.c.b16 %v510, %v509
    %v525 = vpack.c.b16 %v512, %v511
    %v526 = vpack.c.b16 %v514, %v513
    %v527 = vpack.c.b16 %v516, %v515
    %v528 = vpack.c.b16 %v518, %v517
    %v529 = vpack.c.b16 %v520, %v519
    %v530 = vpack.c.b16 %v522, %v521
    %539 = vmatprep.subr.bf16.mxu0 0
    %540 = vmatpush1.bf16.msra.mxu0 %v523
    %541 = vmatprep.subr.bf16.mxu0 0
    %542 = vmatpush1.bf16.msra.mxu0 %v524
    %543 = vmatprep.subr.bf16.mxu0 0
    %544 = vmatpush1.bf16.msra.mxu0 %v525
    %545 = vmatprep.subr.bf16.mxu0 0
    %546 = vmatpush1.bf16.msra.mxu0 %v526
    %547 = vmatprep.subr.bf16.mxu0 0
    %548 = vmatpush1.bf16.msra.mxu0 %v527
    %549 = vmatprep.subr.bf16.mxu0 0
    %550 = vmatpush1.bf16.msra.mxu0 %v528
    %551 = vmatprep.subr.bf16.mxu0 0
    %552 = vmatpush1.bf16.msra.mxu0 %v529
    %553 = vmatprep.subr.bf16.mxu0 0
    %554 = vmatpush1.bf16.msra.mxu0 %v530
    %555 = vmatprep.subr.bf16.mxu0 0
    %556 = vmatpush1.bf16.msra.mxu0 0
    %557 = vmatprep.subr.bf16.mxu0 0
    %558 = vmatpush1.bf16.msra.mxu0 0
    %559 = vmatprep.subr.bf16.mxu0 0
    %560 = vmatpush1.bf16.msra.mxu0 0
    %561 = vmatprep.subr.bf16.mxu0 0
    %562 = vmatpush1.bf16.msra.mxu0 0
    %563 = vmatprep.subr.bf16.mxu0 0
    %564 = vmatpush1.bf16.msra.mxu0 0
    %565 = vmatprep.subr.bf16.mxu0 0
    %566 = vmatpush1.bf16.msra.mxu0 0
    %567 = vmatprep.subr.bf16.mxu0 0
    %568 = vmatpush1.bf16.msra.mxu0 0
    %569 = vmatprep.subr.bf16.mxu0 0
    %570 = vmatpush1.bf16.msra.mxu0 0
    %571 = vmatprep.mubr.bf16.mxu0 0
    %572 = vmatmul.mubr.bf16.gmra.mrb[0].mxu0 %v468
    %v573 = vpop.f32.mrb[0].mxu0
    %v574 = vadd.f32 %v490, %v573
    %v575 = vpop.f32.mrb[0].mxu0
    %v576 = vpop.f32.mrb[0].mxu0
    %v577 = vpop.f32.mrb[0].mxu0
    %578 = vdwg.mxu0
    %579 = vst [vmem:[#allocation2] sm:$0xff] %v574
    // Predicated region
    $region34: #{mlp_forward.1} parent=1 // pred_check
      _
    $region35: #{mlp_forward.1} parent=1 // pred_check_branch
      %581 = sbr.rel (0) target = $region37
    $region36: #{mlp_forward.1} parent=1 // pred_region
      %s583 = ssub.s32 128, 128
      %584 = vsyncadd [#allocation3], %s583
      %s586 = sshll.u32 [#allocation2], 4
      %s587 = int_to_ptr.vmem [resolvable:$true] %s586
      %589 = dma.vmem_to_hbm [thread:$0]  %s587, 128, %s8, [#allocation3]
    $region37: #{mlp_forward.1} parent=1 // pred_fallthru
      _
    // Predicated region
    $region38: #{mlp_forward.1} parent=1 // pred_check
      _
    $region39: #{mlp_forward.1} parent=1 // pred_check_branch
      %591 = sbr.rel (0) target = $region41
    $region40: #{mlp_forward.1} parent=1 // pred_region
      %592 = dma.done [#allocation3], 128
    $region41: #{mlp_forward.1} parent=1 // pred_fallthru
      _
    %593 = vsyncpa [#allocation3], 1

</llo_original>
